<compile_context>
chip_gen: v5e
topology: v5e:2x2
jax: 0.10.0
libtpu: 0.0.40
codegen_flags: <defaults>
</compile_context>

<pallas_src>
import jax
import jax.numpy as jnp
from jax.experimental import pallas as pl
from jax.experimental.pallas import tpu as pltpu


def _round_up(x, m):
    return (x + m - 1) // m * m


def _double_q_kernel(
    s_ref, a_ref,
    w1s1_ref, w1a1_ref, b11_ref, w21_ref, b21_ref, w31_ref, b31_ref,
    w1s2_ref, w1a2_ref, b12_ref, w22_ref, b22_ref, w32_ref, b32_ref,
    q1_ref, q2_ref,
):
    s = s_ref[...]   # bf16 [TILE_B, S]
    a = a_ref[...]   # bf16 [TILE_B, A]

    def q_head(w1s, w1a, b1, w2, b2, w3row, b3):
        # Layer 1: implicit concat(state, action) via split weights (MXU bf16 -> f32 acc).
        h1 = (jnp.dot(s, w1s[...], preferred_element_type=jnp.float32)
              + jnp.dot(a, w1a[...], preferred_element_type=jnp.float32)
              + b1[...])
        h1 = jnp.maximum(h1, 0.0)
        # Layer 2 (MXU bf16 -> f32 acc).
        h2 = jnp.dot(h1.astype(jnp.bfloat16), w2[...],
                     preferred_element_type=jnp.float32) + b2[...]
        h2 = jnp.maximum(h2, 0.0)
        # Layer 3 (out_dim = 1): VPU broadcast-multiply + lane reduction, f32.
        return jnp.sum(h2 * w3row[...], axis=-1, keepdims=True) + b3[...]

    q1_ref[...] = q_head(w1s1_ref, w1a1_ref, b11_ref, w21_ref, b21_ref,
                         w31_ref, b31_ref).astype(q1_ref.dtype)
    q2_ref[...] = q_head(w1s2_ref, w1a2_ref, b12_ref, w22_ref, b22_ref,
                         w32_ref, b32_ref).astype(q2_ref.dtype)


def double_q_forward(state, action, params1, params2, *, tile_b=256):
    """state: [B, S] f32, action: [B, A] f32 -> (q1 [B,1] f32, q2 [B,1] f32)."""
    B, S = state.shape
    _, A = action.shape
    H = params1[0].shape[1]

    # TILE_B sized for v7x's smaller (64 MiB) VMEM; sublane-aligned (multiple of 8).
    tile_b = min(_round_up(tile_b, 8), _round_up(B, 8))
    b_pad = _round_up(B, tile_b)
    grid = (b_pad // tile_b,)

    # Stream inputs as bf16 (halves HBM traffic on the dominant input).
    s_bf = state.astype(jnp.bfloat16)
    a_bf = action.astype(jnp.bfloat16)
    if b_pad != B:
        s_bf = jnp.pad(s_bf, ((0, b_pad - B), (0, 0)))
        a_bf = jnp.pad(a_bf, ((0, b_pad - B), (0, 0)))

    def prep(params):
        w1, b1, w2, b2, w3, b3 = params
        return (w1[:S].astype(jnp.bfloat16),   # [S, H]
                w1[S:].astype(jnp.bfloat16),   # [A, H]
                b1,                            # [1, H] f32
                w2.astype(jnp.bfloat16),       # [H, H]
                b2,                            # [1, H] f32
                w3,                            # [1, H] f32 (row, VPU path)
                b3)                            # [1, 1] f32

    head1 = prep(params1)
    head2 = prep(params2)

    def x_spec(d):
        return pl.BlockSpec((tile_b, d), lambda i: (i, 0))

    def w_spec(shape):
        return pl.BlockSpec(shape, lambda i: (0, 0))

    head_specs = [
        w_spec((S, H)), w_spec((A, H)), w_spec((1, H)),
        w_spec((H, H)), w_spec((1, H)),
        w_spec((1, H)), w_spec((1, 1)),
    ]
    in_specs = [x_spec(S), x_spec(A)] + head_specs + head_specs
    out_spec = pl.BlockSpec((tile_b, 1), lambda i: (i, 0))
    # TODO(synk): output last-dim is 1 (lane-sparse stores); writeback volume is
    # tiny here so the lane-dense-output transform was skipped for simplicity.

    flops = 4 * b_pad * ((S + A) * H + H * H + H)
    param_bytes = sum(int(p.size) * p.dtype.itemsize for p in head1 + head2)
    bytes_accessed = (int(s_bf.size) * 2 + int(a_bf.size) * 2
                      + param_bytes + 2 * b_pad * 4)

    q1, q2 = pl.pallas_call(
        _double_q_kernel,
        grid=grid,
        in_specs=in_specs,
        out_specs=[out_spec, out_spec],
        out_shape=(jax.ShapeDtypeStruct((b_pad, 1), jnp.float32),
                   jax.ShapeDtypeStruct((b_pad, 1), jnp.float32)),
        compiler_params=pltpu.CompilerParams(
            dimension_semantics=("parallel",)),
        cost_estimate=pl.CostEstimate(flops=flops, transcendentals=0,
                                      bytes_accessed=bytes_accessed),
    )(s_bf, a_bf, *head1, *head2)

    return q1[:B], q2[:B]


def init_mlp_params(key, input_dim, hidden_size=256):
    """Matches torch.nn.Linear default init (U[-1/sqrt(fan_in), 1/sqrt(fan_in)]).

    Layout: w1 [in, H], b1 [1, H], w2 [H, H], b2 [1, H], w3 [1, H] (row), b3 [1, 1].
    """
    def layer(key, d_in, w_shape, b_shape):
        kw, kb = jax.random.split(key)
        bound = 1.0 / jnp.sqrt(d_in)
        w = jax.random.uniform(kw, w_shape, jnp.float32, -bound, bound)
        b = jax.random.uniform(kb, b_shape, jnp.float32, -bound, bound)
        return w, b

    k1, k2, k3 = jax.random.split(key, 3)
    w1, b1 = layer(k1, input_dim, (input_dim, hidden_size), (1, hidden_size))
    w2, b2 = layer(k2, hidden_size, (hidden_size, hidden_size), (1, hidden_size))
    w3, b3 = layer(k3, hidden_size, (1, hidden_size), (1, 1))
    return (w1, b1, w2, b2, w3, b3)


def double_q_reference(state, action, params1, params2):
    """Plain-JAX f32 reference of DoubleQFunc.forward."""
    x = jnp.concatenate([state, action], axis=1)

    def mlp(params):
        w1, b1, w2, b2, w3, b3 = params
        h1 = jnp.maximum(x @ w1 + b1, 0.0)
        h2 = jnp.maximum(h1 @ w2 + b2, 0.0)
        return h2 @ w3.T + b3

    return mlp(params1), mlp(params2)


if __name__ == "__main__":
    # Small shapes consistent with the module: batch=8, state=16, action=8, hidden=32.
    B, STATE_DIM, ACTION_DIM, HIDDEN = 8, 16, 8, 32

    key = jax.random.PRNGKey(0)
    key, ks, ka, k1, k2 = jax.random.split(key, 5)
    state = jax.random.normal(ks, (B, STATE_DIM), jnp.float32)
    action = jax.random.normal(ka, (B, ACTION_DIM), jnp.float32)

    params1 = init_mlp_params(k1, STATE_DIM + ACTION_DIM, HIDDEN)
    params2 = init_mlp_params(k2, STATE_DIM + ACTION_DIM, HIDDEN)

    q1, q2 = double_q_forward(state, action, params1, params2)
    (q1, q2) = jax.block_until_ready((q1, q2))

    r1, r2 = double_q_reference(state, action, params1, params2)
    assert q1.shape == (B, 1) and q2.shape == (B, 1), (q1.shape, q2.shape)
    # bf16 matmul operands (f32 accumulation) -> looser tolerance vs f32 reference.
    assert jnp.allclose(q1, r1, atol=3e-2, rtol=3e-2), (q1, r1)
    assert jnp.allclose(q2, r2, atol=3e-2, rtol=3e-2), (q2, r2)

    print("KERNEL_OK")
</pallas_src>

<mosaic_0001>
module attributes {stable_mosaic.version = 11 : i64} {
  func.func @_double_q_kernel(%arg0: i32, %arg1: memref<8x16xbf16, #tpu.memory_space<vmem>>, %arg2: memref<8x8xbf16, #tpu.memory_space<vmem>>, %arg3: memref<16x32xbf16, #tpu.memory_space<vmem>>, %arg4: memref<8x32xbf16, #tpu.memory_space<vmem>>, %arg5: memref<1x32xf32, #tpu.memory_space<vmem>>, %arg6: memref<32x32xbf16, #tpu.memory_space<vmem>>, %arg7: memref<1x32xf32, #tpu.memory_space<vmem>>, %arg8: memref<1x32xf32, #tpu.memory_space<vmem>>, %arg9: memref<1x1xf32, #tpu.memory_space<vmem>>, %arg10: memref<16x32xbf16, #tpu.memory_space<vmem>>, %arg11: memref<8x32xbf16, #tpu.memory_space<vmem>>, %arg12: memref<1x32xf32, #tpu.memory_space<vmem>>, %arg13: memref<32x32xbf16, #tpu.memory_space<vmem>>, %arg14: memref<1x32xf32, #tpu.memory_space<vmem>>, %arg15: memref<1x32xf32, #tpu.memory_space<vmem>>, %arg16: memref<1x1xf32, #tpu.memory_space<vmem>>, %arg17: memref<8x1xf32, #tpu.memory_space<vmem>>, %arg18: memref<8x1xf32, #tpu.memory_space<vmem>>) attributes {dimension_semantics = [#tpu.dimension_semantics<parallel>], iteration_bounds = array<i64: 1>, scalar_prefetch = 0 : i64, scratch_operands = 0 : i64, tpu.core_type = #tpu.core_type<tc>, window_params = [{transform_indices = @transform_0, window_bounds = array<i64: 8, 16>}, {transform_indices = @transform_1, window_bounds = array<i64: 8, 8>}, {pipeline_mode = #tpu.pipeline_mode<synchronous>, transform_indices = @transform_2, window_bounds = array<i64: 16, 32>}, {pipeline_mode = #tpu.pipeline_mode<synchronous>, transform_indices = @transform_3, window_bounds = array<i64: 8, 32>}, {pipeline_mode = #tpu.pipeline_mode<synchronous>, transform_indices = @transform_4, window_bounds = array<i64: 1, 32>}, {pipeline_mode = #tpu.pipeline_mode<synchronous>, transform_indices = @transform_5, window_bounds = array<i64: 32, 32>}, {pipeline_mode = #tpu.pipeline_mode<synchronous>, transform_indices = @transform_6, window_bounds = array<i64: 1, 32>}, {pipeline_mode = #tpu.pipeline_mode<synchronous>, transform_indices = @transform_7, window_bounds = array<i64: 1, 32>}, {pipeline_mode = #tpu.pipeline_mode<synchronous>, transform_indices = @transform_8, window_bounds = array<i64: 1, 1>}, {pipeline_mode = #tpu.pipeline_mode<synchronous>, transform_indices = @transform_9, window_bounds = array<i64: 16, 32>}, {pipeline_mode = #tpu.pipeline_mode<synchronous>, transform_indices = @transform_10, window_bounds = array<i64: 8, 32>}, {pipeline_mode = #tpu.pipeline_mode<synchronous>, transform_indices = @transform_11, window_bounds = array<i64: 1, 32>}, {pipeline_mode = #tpu.pipeline_mode<synchronous>, transform_indices = @transform_12, window_bounds = array<i64: 32, 32>}, {pipeline_mode = #tpu.pipeline_mode<synchronous>, transform_indices = @transform_13, window_bounds = array<i64: 1, 32>}, {pipeline_mode = #tpu.pipeline_mode<synchronous>, transform_indices = @transform_14, window_bounds = array<i64: 1, 32>}, {pipeline_mode = #tpu.pipeline_mode<synchronous>, transform_indices = @transform_15, window_bounds = array<i64: 1, 1>}, {transform_indices = @transform_16, window_bounds = array<i64: 8, 1>}, {transform_indices = @transform_17, window_bounds = array<i64: 8, 1>}]} {
    %c0 = arith.constant 0 : index
    %c0_0 = arith.constant 0 : index
    %0 = vector.load %arg1[%c0, %c0_0] : memref<8x16xbf16, #tpu.memory_space<vmem>>, vector<8x16xbf16>
    %c0_1 = arith.constant 0 : index
    %c0_2 = arith.constant 0 : index
    %1 = vector.load %arg2[%c0_1, %c0_2] : memref<8x8xbf16, #tpu.memory_space<vmem>>, vector<8x8xbf16>
    %c0_3 = arith.constant 0 : index
    %c0_4 = arith.constant 0 : index
    %2 = vector.load %arg3[%c0_3, %c0_4] : memref<16x32xbf16, #tpu.memory_space<vmem>>, vector<16x32xbf16>
    %cst = arith.constant dense<0.000000e+00> : vector<8x32xf32>
    %3 = tpu.matmul %0, %2, %cst {dimension_numbers = #tpu.dot_dimension_numbers<[1], [0], [0], [1], [0, 0, 1, 1], [], []>} : vector<8x16xbf16>, vector<16x32xbf16>, vector<8x32xf32> -> vector<8x32xf32>
    %c0_5 = arith.constant 0 : index
    %c0_6 = arith.constant 0 : index
    %4 = vector.load %arg4[%c0_5, %c0_6] : memref<8x32xbf16, #tpu.memory_space<vmem>>, vector<8x32xbf16>
    %cst_7 = arith.constant dense<0.000000e+00> : vector<8x32xf32>
    %5 = tpu.matmul %1, %4, %cst_7 {dimension_numbers = #tpu.dot_dimension_numbers<[1], [0], [0], [1], [0, 0, 1, 1], [], []>} : vector<8x8xbf16>, vector<8x32xbf16>, vector<8x32xf32> -> vector<8x32xf32>
    %6 = arith.addf %3, %5 : vector<8x32xf32>
    %c0_8 = arith.constant 0 : index
    %c0_9 = arith.constant 0 : index
    %7 = vector.load %arg5[%c0_8, %c0_9] : memref<1x32xf32, #tpu.memory_space<vmem>>, vector<1x32xf32>
    %8 = vector.broadcast %7 : vector<1x32xf32> to vector<8x32xf32>
    %9 = arith.addf %6, %8 : vector<8x32xf32>
    %cst_10 = arith.constant 0.000000e+00 : f32
    %10 = vector.broadcast %cst_10 : f32 to vector<8x32xf32>
    %11 = arith.maximumf %9, %10 : vector<8x32xf32>
    %12 = arith.truncf %11 : vector<8x32xf32> to vector<8x32xbf16>
    %c0_11 = arith.constant 0 : index
    %c0_12 = arith.constant 0 : index
    %13 = vector.load %arg6[%c0_11, %c0_12] : memref<32x32xbf16, #tpu.memory_space<vmem>>, vector<32x32xbf16>
    %cst_13 = arith.constant dense<0.000000e+00> : vector<8x32xf32>
    %14 = tpu.matmul %12, %13, %cst_13 {dimension_numbers = #tpu.dot_dimension_numbers<[1], [0], [0], [1], [0, 0, 1, 1], [], []>} : vector<8x32xbf16>, vector<32x32xbf16>, vector<8x32xf32> -> vector<8x32xf32>
    %c0_14 = arith.constant 0 : index
    %c0_15 = arith.constant 0 : index
    %15 = vector.load %arg7[%c0_14, %c0_15] : memref<1x32xf32, #tpu.memory_space<vmem>>, vector<1x32xf32>
    %16 = vector.broadcast %15 : vector<1x32xf32> to vector<8x32xf32>
    %17 = arith.addf %14, %16 : vector<8x32xf32>
    %cst_16 = arith.constant 0.000000e+00 : f32
    %18 = vector.broadcast %cst_16 : f32 to vector<8x32xf32>
    %19 = arith.maximumf %17, %18 : vector<8x32xf32>
    %c0_17 = arith.constant 0 : index
    %c0_18 = arith.constant 0 : index
    %20 = vector.load %arg8[%c0_17, %c0_18] : memref<1x32xf32, #tpu.memory_space<vmem>>, vector<1x32xf32>
    %21 = vector.broadcast %20 : vector<1x32xf32> to vector<8x32xf32>
    %22 = arith.mulf %19, %21 : vector<8x32xf32>
    %cst_19 = arith.constant dense<0.000000e+00> : vector<8xf32>
    %23 = vector.multi_reduction <add>, %22, %cst_19 [1] : vector<8x32xf32> to vector<8xf32>
    %24 = vector.shape_cast %23 : vector<8xf32> to vector<8x1xf32>
    %c0_20 = arith.constant 0 : index
    %c0_21 = arith.constant 0 : index
    %25 = vector.load %arg9[%c0_20, %c0_21] : memref<1x1xf32, #tpu.memory_space<vmem>>, vector<1x1xf32>
    %26 = vector.broadcast %25 : vector<1x1xf32> to vector<8x1xf32>
    %27 = arith.addf %24, %26 : vector<8x1xf32>
    %c0_22 = arith.constant 0 : index
    %c0_23 = arith.constant 0 : index
    %28 = vector.load %arg17[%c0_22, %c0_23] : memref<8x1xf32, #tpu.memory_space<vmem>>, vector<8x1xf32>
    tpu.vector_store %arg17[%c0_22, %c0_23], %27 {strides = array<i32>} : memref<8x1xf32, #tpu.memory_space<vmem>>, vector<8x1xf32>,
    %c0_24 = arith.constant 0 : index
    %c0_25 = arith.constant 0 : index
    %29 = vector.load %arg10[%c0_24, %c0_25] : memref<16x32xbf16, #tpu.memory_space<vmem>>, vector<16x32xbf16>
    %cst_26 = arith.constant dense<0.000000e+00> : vector<8x32xf32>
    %30 = tpu.matmul %0, %29, %cst_26 {dimension_numbers = #tpu.dot_dimension_numbers<[1], [0], [0], [1], [0, 0, 1, 1], [], []>} : vector<8x16xbf16>, vector<16x32xbf16>, vector<8x32xf32> -> vector<8x32xf32>
    %c0_27 = arith.constant 0 : index
    %c0_28 = arith.constant 0 : index
    %31 = vector.load %arg11[%c0_27, %c0_28] : memref<8x32xbf16, #tpu.memory_space<vmem>>, vector<8x32xbf16>
    %cst_29 = arith.constant dense<0.000000e+00> : vector<8x32xf32>
    %32 = tpu.matmul %1, %31, %cst_29 {dimension_numbers = #tpu.dot_dimension_numbers<[1], [0], [0], [1], [0, 0, 1, 1], [], []>} : vector<8x8xbf16>, vector<8x32xbf16>, vector<8x32xf32> -> vector<8x32xf32>
    %33 = arith.addf %30, %32 : vector<8x32xf32>
    %c0_30 = arith.constant 0 : index
    %c0_31 = arith.constant 0 : index
    %34 = vector.load %arg12[%c0_30, %c0_31] : memref<1x32xf32, #tpu.memory_space<vmem>>, vector<1x32xf32>
    %35 = vector.broadcast %34 : vector<1x32xf32> to vector<8x32xf32>
    %36 = arith.addf %33, %35 : vector<8x32xf32>
    %cst_32 = arith.constant 0.000000e+00 : f32
    %37 = vector.broadcast %cst_32 : f32 to vector<8x32xf32>
    %38 = arith.maximumf %36, %37 : vector<8x32xf32>
    %39 = arith.truncf %38 : vector<8x32xf32> to vector<8x32xbf16>
    %c0_33 = arith.constant 0 : index
    %c0_34 = arith.constant 0 : index
    %40 = vector.load %arg13[%c0_33, %c0_34] : memref<32x32xbf16, #tpu.memory_space<vmem>>, vector<32x32xbf16>
    %cst_35 = arith.constant dense<0.000000e+00> : vector<8x32xf32>
    %41 = tpu.matmul %39, %40, %cst_35 {dimension_numbers = #tpu.dot_dimension_numbers<[1], [0], [0], [1], [0, 0, 1, 1], [], []>} : vector<8x32xbf16>, vector<32x32xbf16>, vector<8x32xf32> -> vector<8x32xf32>
    %c0_36 = arith.constant 0 : index
    %c0_37 = arith.constant 0 : index
    %42 = vector.load %arg14[%c0_36, %c0_37] : memref<1x32xf32, #tpu.memory_space<vmem>>, vector<1x32xf32>
    %43 = vector.broadcast %42 : vector<1x32xf32> to vector<8x32xf32>
    %44 = arith.addf %41, %43 : vector<8x32xf32>
    %cst_38 = arith.constant 0.000000e+00 : f32
    %45 = vector.broadcast %cst_38 : f32 to vector<8x32xf32>
    %46 = arith.maximumf %44, %45 : vector<8x32xf32>
    %c0_39 = arith.constant 0 : index
    %c0_40 = arith.constant 0 : index
    %47 = vector.load %arg15[%c0_39, %c0_40] : memref<1x32xf32, #tpu.memory_space<vmem>>, vector<1x32xf32>
    %48 = vector.broadcast %47 : vector<1x32xf32> to vector<8x32xf32>
    %49 = arith.mulf %46, %48 : vector<8x32xf32>
    %cst_41 = arith.constant dense<0.000000e+00> : vector<8xf32>
    %50 = vector.multi_reduction <add>, %49, %cst_41 [1] : vector<8x32xf32> to vector<8xf32>
    %51 = vector.shape_cast %50 : vector<8xf32> to vector<8x1xf32>
    %c0_42 = arith.constant 0 : index
    %c0_43 = arith.constant 0 : index
    %52 = vector.load %arg16[%c0_42, %c0_43] : memref<1x1xf32, #tpu.memory_space<vmem>>, vector<1x1xf32>
    %53 = vector.broadcast %52 : vector<1x1xf32> to vector<8x1xf32>
    %54 = arith.addf %51, %53 : vector<8x1xf32>
    %c0_44 = arith.constant 0 : index
    %c0_45 = arith.constant 0 : index
    %55 = vector.load %arg18[%c0_44, %c0_45] : memref<8x1xf32, #tpu.memory_space<vmem>>, vector<8x1xf32>
    tpu.vector_store %arg18[%c0_44, %c0_45], %54 {strides = array<i32>} : memref<8x1xf32, #tpu.memory_space<vmem>>, vector<8x1xf32>,
    return
  }
  func.func @transform_0(%arg0: i32) -> (i32, i32) {
    %c0_i32 = arith.constant 0 : i32
    %c0_i32_0 = arith.constant 0 : i32
    return %arg0, %c0_i32 : i32, i32
  }
  func.func @transform_1(%arg0: i32) -> (i32, i32) {
    %c0_i32 = arith.constant 0 : i32
    %c0_i32_0 = arith.constant 0 : i32
    return %arg0, %c0_i32 : i32, i32
  }
  func.func @transform_2(%arg0: i32) -> (i32, i32) {
    %c0_i32 = arith.constant 0 : i32
    %c0_i32_0 = arith.constant 0 : i32
    %c0_i32_1 = arith.constant 0 : i32
    return %c0_i32, %c0_i32_0 : i32, i32
  }
  func.func @transform_3(%arg0: i32) -> (i32, i32) {
    %c0_i32 = arith.constant 0 : i32
    %c0_i32_0 = arith.constant 0 : i32
    %c0_i32_1 = arith.constant 0 : i32
    return %c0_i32, %c0_i32_0 : i32, i32
  }
  func.func @transform_4(%arg0: i32) -> (i32, i32) {
    %c0_i32 = arith.constant 0 : i32
    %c0_i32_0 = arith.constant 0 : i32
    %c0_i32_1 = arith.constant 0 : i32
    return %c0_i32, %c0_i32_0 : i32, i32
  }
  func.func @transform_5(%arg0: i32) -> (i32, i32) {
    %c0_i32 = arith.constant 0 : i32
    %c0_i32_0 = arith.constant 0 : i32
    %c0_i32_1 = arith.constant 0 : i32
    return %c0_i32, %c0_i32_0 : i32, i32
  }
  func.func @transform_6(%arg0: i32) -> (i32, i32) {
    %c0_i32 = arith.constant 0 : i32
    %c0_i32_0 = arith.constant 0 : i32
    %c0_i32_1 = arith.constant 0 : i32
    return %c0_i32, %c0_i32_0 : i32, i32
  }
  func.func @transform_7(%arg0: i32) -> (i32, i32) {
    %c0_i32 = arith.constant 0 : i32
    %c0_i32_0 = arith.constant 0 : i32
    %c0_i32_1 = arith.constant 0 : i32
    return %c0_i32, %c0_i32_0 : i32, i32
  }
  func.func @transform_8(%arg0: i32) -> (i32, i32) {
    %c0_i32 = arith.constant 0 : i32
    %c0_i32_0 = arith.constant 0 : i32
    %c0_i32_1 = arith.constant 0 : i32
    return %c0_i32, %c0_i32_0 : i32, i32
  }
  func.func @transform_9(%arg0: i32) -> (i32, i32) {
    %c0_i32 = arith.constant 0 : i32
    %c0_i32_0 = arith.constant 0 : i32
    %c0_i32_1 = arith.constant 0 : i32
    return %c0_i32, %c0_i32_0 : i32, i32
  }
  func.func @transform_10(%arg0: i32) -> (i32, i32) {
    %c0_i32 = arith.constant 0 : i32
    %c0_i32_0 = arith.constant 0 : i32
    %c0_i32_1 = arith.constant 0 : i32
    return %c0_i32, %c0_i32_0 : i32, i32
  }
  func.func @transform_11(%arg0: i32) -> (i32, i32) {
    %c0_i32 = arith.constant 0 : i32
    %c0_i32_0 = arith.constant 0 : i32
    %c0_i32_1 = arith.constant 0 : i32
    return %c0_i32, %c0_i32_0 : i32, i32
  }
  func.func @transform_12(%arg0: i32) -> (i32, i32) {
    %c0_i32 = arith.constant 0 : i32
    %c0_i32_0 = arith.constant 0 : i32
    %c0_i32_1 = arith.constant 0 : i32
    return %c0_i32, %c0_i32_0 : i32, i32
  }
  func.func @transform_13(%arg0: i32) -> (i32, i32) {
    %c0_i32 = arith.constant 0 : i32
    %c0_i32_0 = arith.constant 0 : i32
    %c0_i32_1 = arith.constant 0 : i32
    return %c0_i32, %c0_i32_0 : i32, i32
  }
  func.func @transform_14(%arg0: i32) -> (i32, i32) {
    %c0_i32 = arith.constant 0 : i32
    %c0_i32_0 = arith.constant 0 : i32
    %c0_i32_1 = arith.constant 0 : i32
    return %c0_i32, %c0_i32_0 : i32, i32
  }
  func.func @transform_15(%arg0: i32) -> (i32, i32) {
    %c0_i32 = arith.constant 0 : i32
    %c0_i32_0 = arith.constant 0 : i32
    %c0_i32_1 = arith.constant 0 : i32
    return %c0_i32, %c0_i32_0 : i32, i32
  }
  func.func @transform_16(%arg0: i32) -> (i32, i32) {
    %c0_i32 = arith.constant 0 : i32
    %c0_i32_0 = arith.constant 0 : i32
    return %arg0, %c0_i32 : i32, i32
  }
  func.func @transform_17(%arg0: i32) -> (i32, i32) {
    %c0_i32 = arith.constant 0 : i32
    %c0_i32_0 = arith.constant 0 : i32
    return %arg0, %c0_i32 : i32, i32
  }
}

</mosaic_0001>

<llo_original>
// kernel: tpu_custom_call.1
$region0: #{tpu_custom_call.1}
  #allocation0 [shape = 'u32[]', space=smem, size = 0x4, offset = 0x4, fixed_abs, tag = 'smem constant byte address 0x4 - core index']
  #allocation1 [shape = 'u32[72,128]{1,0:T(1,128)}', space=vmem, size = 0x9000, scoped, tag = 'internal scratch']
  #allocation2 [shape = 'f32[1,1]{1,0:T(1,128)S(1)}', space=vmem, size = 0x200, scoped, tag = 'scoped memory for tpu_custom_call.1']
  #allocation3 [shape = 'f32[1,1]{1,0:T(1,128)S(1)}', space=vmem, size = 0x200, scoped, tag = 'scoped memory for tpu_custom_call.1']
  %s0 = inlined_call_operand.hbm [shape: bf16[8,16], index: 0, kind: input, shape index: {}]
  %s1 = inlined_call_operand.hbm [shape: bf16[8,8], index: 1, kind: input, shape index: {}]
  %s2 = inlined_call_operand.hbm [shape: bf16[16,32], index: 2, kind: input, shape index: {}]
  %s3 = inlined_call_operand.hbm [shape: bf16[8,32], index: 3, kind: input, shape index: {}]
  %s4 = inlined_call_operand.hbm [shape: f32[1,32], index: 4, kind: input, shape index: {}]
  %s5 = inlined_call_operand.hbm [shape: bf16[32,32], index: 5, kind: input, shape index: {}]
  %s6 = inlined_call_operand.hbm [shape: f32[1,32], index: 6, kind: input, shape index: {}]
  %s7 = inlined_call_operand.hbm [shape: f32[1,32], index: 7, kind: input, shape index: {}]
  %s8 = inlined_call_operand.<no memory space> [shape: f32[1,1], index: 8, kind: input, shape index: {}]
  %s9 = inlined_call_operand.vmem [shape: bf16[16,32], index: 9, kind: input, shape index: {}]
  %s10 = inlined_call_operand.vmem [shape: bf16[8,32], index: 10, kind: input, shape index: {}]
  %s11 = inlined_call_operand.vmem [shape: f32[1,32], index: 11, kind: input, shape index: {}]
  %s12 = inlined_call_operand.hbm [shape: bf16[32,32], index: 12, kind: input, shape index: {}]
  %s13 = inlined_call_operand.vmem [shape: f32[1,32], index: 13, kind: input, shape index: {}]
  %s14 = inlined_call_operand.vmem [shape: f32[1,32], index: 14, kind: input, shape index: {}]
  %s15 = inlined_call_operand.<no memory space> [shape: f32[1,1], index: 15, kind: input, shape index: {}]
  %s16 = inlined_call_operand.vmem [shape: f32[8,1], index: 16, kind: output, shape index: {0}]
  %s17 = inlined_call_operand.vmem [shape: f32[8,1], index: 17, kind: output, shape index: {1}]
  %18 = xla_tuple %s16, %s17
  %s19 = sld [smem:[#allocation0]]
  $region118: #{tpu_custom_call.1} parent=0
    _
  %s21 = ssub.s32 1, %s19
  %s22 = scalar_select 0, %s21, %s19
  %v23 = vstv %s8
  %24 = vst [vmem:[#allocation2] sm:$0x1] %v23
  %v25 = vstv %s15
  %26 = vst [vmem:[#allocation3] sm:$0x1] %v25
  $region1: #{tpu_custom_call.1} parent=0
    #allocation4 [shape = 'u8[2048]{0}', space=vmem, size = 0x800, scoped, tag = 'input window, operand 0, single buffered']
    #allocation5 [shape = 's32[1]{0}', space=sflag, size = 0x4, scoped, tag = 'scoped memory for tpu_custom_call.1']
    #allocation6 [shape = 'u8[2048]{0}', space=vmem, size = 0x800, scoped, tag = 'input window, operand 1, single buffered']
    #allocation7 [shape = 's32[1]{0}', space=sflag, size = 0x4, scoped, tag = 'scoped memory for tpu_custom_call.1']
    #allocation8 [shape = 'u8[4096]{0}', space=vmem, size = 0x1000, scoped, tag = 'input window, operand 2, single buffered']
    #allocation9 [shape = 'u8[2048]{0}', space=vmem, size = 0x800, scoped, tag = 'input window, operand 3, single buffered']
    #allocation10 [shape = 's32[1]{0}', space=sflag, size = 0x4, scoped, tag = 'scoped memory for tpu_custom_call.1']
    #allocation11 [shape = 'u8[512]{0}', space=vmem, size = 0x400, scoped, tag = 'input window, operand 4, single buffered']
    #allocation12 [shape = 'u8[8192]{0}', space=vmem, size = 0x2000, scoped, tag = 'input window, operand 5, single buffered']
    #allocation13 [shape = 's32[1]{0}', space=sflag, size = 0x4, scoped, tag = 'scoped memory for tpu_custom_call.1']
    #allocation14 [shape = 'u8[512]{0}', space=vmem, size = 0x400, scoped, tag = 'input window, operand 6, single buffered']
    #allocation15 [shape = 'u8[512]{0}', space=vmem, size = 0x400, scoped, tag = 'input window, operand 7, single buffered']
    #allocation16 [shape = 's32[1]{0}', space=sflag, size = 0x4, scoped, tag = 'scoped memory for tpu_custom_call.1']
    #allocation17 [shape = 'u8[8192]{0}', space=vmem, size = 0x2000, scoped, tag = 'input window, operand 12, single buffered']
    %27 = vsyncpa [#allocation5], 0
    %28 = vsyncpa [#allocation7], 0
    %29 = vsyncpa [#allocation10], 0
    %30 = vsyncpa [#allocation13], 0
    %31 = vsyncpa [#allocation16], 0
    // Predicated region
    $region2: #{tpu_custom_call.1} parent=1 // pred_check
      _
    $region3: #{tpu_custom_call.1} parent=1 // pred_check_branch
      %33 = sbr.rel (0) target = $region5
    $region4: #{tpu_custom_call.1} parent=1 // pred_region
      %35 = vsyncadd [#allocation5], 0
      %s37 = sshll.u32 %s0, 4
      %s38 = int_to_ptr.hbm [resolvable:$true] %s37
      %s39 = sshll.u32 [#allocation4], 4
      %s40 = int_to_ptr.vmem [resolvable:$true] %s39
      %42 = dma.hbm_to_vmem [thread:$0]  %s38, 64, %s40, [#allocation5]
    $region5: #{tpu_custom_call.1} parent=1 // pred_fallthru
      _
    // Predicated region
    $region6: #{tpu_custom_call.1} parent=1 // pred_check
      _
    $region7: #{tpu_custom_call.1} parent=1 // pred_check_branch
      %44 = sbr.rel (0) target = $region9
    $region8: #{tpu_custom_call.1} parent=1 // pred_region
      %46 = vsyncadd [#allocation7], 0
      %s48 = sshll.u32 %s1, 4
      %s49 = int_to_ptr.hbm [resolvable:$true] %s48
      %s50 = sshll.u32 [#allocation6], 4
      %s51 = int_to_ptr.vmem [resolvable:$true] %s50
      %53 = dma.hbm_to_vmem [thread:$0]  %s49, 64, %s51, [#allocation7]
    $region9: #{tpu_custom_call.1} parent=1 // pred_fallthru
      _
    // Predicated region
    $region10: #{tpu_custom_call.1} parent=1 // pred_check
      _
    $region11: #{tpu_custom_call.1} parent=1 // pred_check_branch
      %55 = sbr.rel (0) target = $region13
    $region12: #{tpu_custom_call.1} parent=1 // pred_region
      %57 = vsyncadd [#allocation7], 0
      %s58 = sshll.u32 %s2, 4
      %s59 = int_to_ptr.hbm [resolvable:$true] %s58
      %s60 = sshll.u32 [#allocation8], 4
      %s61 = int_to_ptr.vmem [resolvable:$true] %s60
      %66 = dma.hbm_to_vmem [thread:$0]  %s59, 128, %s61, [#allocation7], 64, 64, 4
    $region13: #{tpu_custom_call.1} parent=1 // pred_fallthru
      _
    // Predicated region
    $region14: #{tpu_custom_call.1} parent=1 // pred_check
      _
    $region15: #{tpu_custom_call.1} parent=1 // pred_check_branch
      %68 = sbr.rel (0) target = $region17
    $region16: #{tpu_custom_call.1} parent=1 // pred_region
      %70 = vsyncadd [#allocation10], 0
      %s72 = sshll.u32 %s3, 4
      %s73 = int_to_ptr.hbm [resolvable:$true] %s72
      %s74 = sshll.u32 [#allocation9], 4
      %s75 = int_to_ptr.vmem [resolvable:$true] %s74
      %77 = dma.hbm_to_vmem [thread:$0]  %s73, 64, %s75, [#allocation10]
    $region17: #{tpu_custom_call.1} parent=1 // pred_fallthru
      _
    // Predicated region
    $region18: #{tpu_custom_call.1} parent=1 // pred_check
      _
    $region19: #{tpu_custom_call.1} parent=1 // pred_check_branch
      %79 = sbr.rel (0) target = $region21
    $region20: #{tpu_custom_call.1} parent=1 // pred_region
      %81 = vsyncadd [#allocation10], 0
      %s83 = sshll.u32 %s4, 4
      %s84 = int_to_ptr.hbm [resolvable:$true] %s83
      %s85 = sshll.u32 [#allocation11], 4
      %s86 = int_to_ptr.vmem [resolvable:$true] %s85
      %88 = dma.hbm_to_vmem [thread:$0]  %s84, 16, %s86, [#allocation10]
    $region21: #{tpu_custom_call.1} parent=1 // pred_fallthru
      _
    // Predicated region
    $region22: #{tpu_custom_call.1} parent=1 // pred_check
      _
    $region23: #{tpu_custom_call.1} parent=1 // pred_check_branch
      %90 = sbr.rel (0) target = $region25
    $region24: #{tpu_custom_call.1} parent=1 // pred_region
      %92 = vsyncadd [#allocation13], 0
      %s93 = sshll.u32 %s5, 4
      %s94 = int_to_ptr.hbm [resolvable:$true] %s93
      %s95 = sshll.u32 [#allocation12], 4
      %s96 = int_to_ptr.vmem [resolvable:$true] %s95
      %101 = dma.hbm_to_vmem [thread:$0]  %s94, 256, %s96, [#allocation13], 64, 64, 4
    $region25: #{tpu_custom_call.1} parent=1 // pred_fallthru
      _
    // Predicated region
    $region26: #{tpu_custom_call.1} parent=1 // pred_check
      _
    $region27: #{tpu_custom_call.1} parent=1 // pred_check_branch
      %103 = sbr.rel (0) target = $region29
    $region28: #{tpu_custom_call.1} parent=1 // pred_region
      %105 = vsyncadd [#allocation13], 0
      %s107 = sshll.u32 %s6, 4
      %s108 = int_to_ptr.hbm [resolvable:$true] %s107
      %s109 = sshll.u32 [#allocation14], 4
      %s110 = int_to_ptr.vmem [resolvable:$true] %s109
      %112 = dma.hbm_to_vmem [thread:$0]  %s108, 16, %s110, [#allocation13]
    $region29: #{tpu_custom_call.1} parent=1 // pred_fallthru
      _
    // Predicated region
    $region30: #{tpu_custom_call.1} parent=1 // pred_check
      _
    $region31: #{tpu_custom_call.1} parent=1 // pred_check_branch
      %114 = sbr.rel (0) target = $region33
    $region32: #{tpu_custom_call.1} parent=1 // pred_region
      %116 = vsyncadd [#allocation16], 0
      %s118 = sshll.u32 %s7, 4
      %s119 = int_to_ptr.hbm [resolvable:$true] %s118
      %s120 = sshll.u32 [#allocation15], 4
      %s121 = int_to_ptr.vmem [resolvable:$true] %s120
      %123 = dma.hbm_to_vmem [thread:$0]  %s119, 16, %s121, [#allocation16]
    $region33: #{tpu_custom_call.1} parent=1 // pred_fallthru
      _
    // Predicated region
    $region34: #{tpu_custom_call.1} parent=1 // pred_check
      _
    $region35: #{tpu_custom_call.1} parent=1 // pred_check_branch
      %125 = sbr.rel (0) target = $region37
    $region36: #{tpu_custom_call.1} parent=1 // pred_region
      _
    $region37: #{tpu_custom_call.1} parent=1 // pred_fallthru
      _
    // Predicated region
    $region38: #{tpu_custom_call.1} parent=1 // pred_check
      _
    $region39: #{tpu_custom_call.1} parent=1 // pred_check_branch
      %127 = sbr.rel (0) target = $region41
    $region40: #{tpu_custom_call.1} parent=1 // pred_region
      _
    $region41: #{tpu_custom_call.1} parent=1 // pred_fallthru
      _
    // Predicated region
    $region42: #{tpu_custom_call.1} parent=1 // pred_check
      _
    $region43: #{tpu_custom_call.1} parent=1 // pred_check_branch
      %129 = sbr.rel (0) target = $region45
    $region44: #{tpu_custom_call.1} parent=1 // pred_region
      _
    $region45: #{tpu_custom_call.1} parent=1 // pred_fallthru
      _
    // Predicated region
    $region46: #{tpu_custom_call.1} parent=1 // pred_check
      _
    $region47: #{tpu_custom_call.1} parent=1 // pred_check_branch
      %131 = sbr.rel (0) target = $region49
    $region48: #{tpu_custom_call.1} parent=1 // pred_region
      _
    $region49: #{tpu_custom_call.1} parent=1 // pred_fallthru
      _
    // Predicated region
    $region50: #{tpu_custom_call.1} parent=1 // pred_check
      _
    $region51: #{tpu_custom_call.1} parent=1 // pred_check_branch
      %133 = sbr.rel (0) target = $region53
    $region52: #{tpu_custom_call.1} parent=1 // pred_region
      %135 = vsyncadd [#allocation16], 0
      %s136 = sshll.u32 %s12, 4
      %s137 = int_to_ptr.hbm [resolvable:$true] %s136
      %s138 = sshll.u32 [#allocation17], 4
      %s139 = int_to_ptr.vmem [resolvable:$true] %s138
      %144 = dma.hbm_to_vmem [thread:$0]  %s137, 256, %s139, [#allocation16], 64, 64, 4
    $region53: #{tpu_custom_call.1} parent=1 // pred_fallthru
      _
    // Predicated region
    $region54: #{tpu_custom_call.1} parent=1 // pred_check
      _
    $region55: #{tpu_custom_call.1} parent=1 // pred_check_branch
      %146 = sbr.rel (0) target = $region57
    $region56: #{tpu_custom_call.1} parent=1 // pred_region
      _
    $region57: #{tpu_custom_call.1} parent=1 // pred_fallthru
      _
    // Predicated region
    $region58: #{tpu_custom_call.1} parent=1 // pred_check
      _
    $region59: #{tpu_custom_call.1} parent=1 // pred_check_branch
      %148 = sbr.rel (0) target = $region61
    $region60: #{tpu_custom_call.1} parent=1 // pred_region
      _
    $region61: #{tpu_custom_call.1} parent=1 // pred_fallthru
      _
    // Predicated region
    $region62: #{tpu_custom_call.1} parent=1 // pred_check
      _
    $region63: #{tpu_custom_call.1} parent=1 // pred_check_branch
      %150 = sbr.rel (0) target = $region65
    $region64: #{tpu_custom_call.1} parent=1 // pred_region
      _
    $region65: #{tpu_custom_call.1} parent=1 // pred_fallthru
      _
    // Predicated region
    $region66: #{tpu_custom_call.1} parent=1 // pred_check
      _
    $region67: #{tpu_custom_call.1} parent=1 // pred_check_branch
      %152 = sbr.rel (0) target = $region69
    $region68: #{tpu_custom_call.1} parent=1 // pred_region
      %154 = dma.done [#allocation5], 64
    $region69: #{tpu_custom_call.1} parent=1 // pred_fallthru
      _
    // Predicated region
    $region70: #{tpu_custom_call.1} parent=1 // pred_check
      _
    $region71: #{tpu_custom_call.1} parent=1 // pred_check_branch
      %156 = sbr.rel (0) target = $region73
    $region72: #{tpu_custom_call.1} parent=1 // pred_region
      %158 = dma.done [#allocation7], 64
    $region73: #{tpu_custom_call.1} parent=1 // pred_fallthru
      _
    // Predicated region
    $region74: #{tpu_custom_call.1} parent=1 // pred_check
      _
    $region75: #{tpu_custom_call.1} parent=1 // pred_check_branch
      %160 = sbr.rel (0) target = $region77
    $region76: #{tpu_custom_call.1} parent=1 // pred_region
      %162 = dma.done [#allocation7], 128
    $region77: #{tpu_custom_call.1} parent=1 // pred_fallthru
      _
    // Predicated region
    $region78: #{tpu_custom_call.1} parent=1 // pred_check
      _
    $region79: #{tpu_custom_call.1} parent=1 // pred_check_branch
      %164 = sbr.rel (0) target = $region81
    $region80: #{tpu_custom_call.1} parent=1 // pred_region
      %166 = dma.done [#allocation10], 64
    $region81: #{tpu_custom_call.1} parent=1 // pred_fallthru
      _
    // Predicated region
    $region82: #{tpu_custom_call.1} parent=1 // pred_check
      _
    $region83: #{tpu_custom_call.1} parent=1 // pred_check_branch
      %168 = sbr.rel (0) target = $region85
    $region84: #{tpu_custom_call.1} parent=1 // pred_region
      %170 = dma.done [#allocation10], 16
    $region85: #{tpu_custom_call.1} parent=1 // pred_fallthru
      _
    // Predicated region
    $region86: #{tpu_custom_call.1} parent=1 // pred_check
      _
    $region87: #{tpu_custom_call.1} parent=1 // pred_check_branch
      %172 = sbr.rel (0) target = $region89
    $region88: #{tpu_custom_call.1} parent=1 // pred_region
      %174 = dma.done [#allocation13], 256
    $region89: #{tpu_custom_call.1} parent=1 // pred_fallthru
      _
    // Predicated region
    $region90: #{tpu_custom_call.1} parent=1 // pred_check
      _
    $region91: #{tpu_custom_call.1} parent=1 // pred_check_branch
      %176 = sbr.rel (0) target = $region93
    $region92: #{tpu_custom_call.1} parent=1 // pred_region
      %178 = dma.done [#allocation13], 16
    $region93: #{tpu_custom_call.1} parent=1 // pred_fallthru
      _
    // Predicated region
    $region94: #{tpu_custom_call.1} parent=1 // pred_check
      _
    $region95: #{tpu_custom_call.1} parent=1 // pred_check_branch
      %180 = sbr.rel (0) target = $region97
    $region96: #{tpu_custom_call.1} parent=1 // pred_region
      %182 = dma.done [#allocation16], 16
    $region97: #{tpu_custom_call.1} parent=1 // pred_fallthru
      _
    // Predicated region
    $region98: #{tpu_custom_call.1} parent=1 // pred_check
      _
    $region99: #{tpu_custom_call.1} parent=1 // pred_check_branch
      %184 = sbr.rel (0) target = $region101
    $region100: #{tpu_custom_call.1} parent=1 // pred_region
      %186 = dma.done [#allocation16], 256
    $region101: #{tpu_custom_call.1} parent=1 // pred_fallthru
      _
    %v188 = vld [vmem:[#allocation4] sm:$0xf]
    %v189 = vld [vmem:[#allocation6] sm:$0xf]
    %v190 = vld [vmem:[#allocation8] sm:$0xf]
    %v191 = vld [vmem:[#allocation8 + $0x4] sm:$0xf]
    %v192 = vld [vmem:[#allocation9] sm:$0xf]
    %vm193 = vcmask 64512
    %v195 = vsel %vm193, %v189, 0
    %vm197 = vcmask 1043456
    %v199 = vsel %vm197, %v192, 0
    %201 = vmatpush.bf16.msra.mxu0 0
    %202 = vmatpush.bf16.msra.mxu0 0
    %203 = vmatpush.bf16.msra.mxu0 0
    %204 = vmatpush.bf16.msra.mxu0 0
    %205 = vmatpush.bf16.msra.mxu0 0
    %206 = vmatpush.bf16.msra.mxu0 0
    %207 = vmatpush.bf16.msra.mxu0 0
    %208 = vmatpush.bf16.msra.mxu0 %v199
    %209 = vmatmul.bf16.gmra.mxu0 %v195
    %v210 = vpop.f32.mrf.mxu0
    %v211 = vadd.f32 0.0, %v210
    %v212 = vpop.f32.mrf.mxu0
    %213 = vdwg.mxu0
    %v216 = vunpack.c.l.b16 %v190
    %v217 = vunpack.c.l.b16 %v191
    %v218 = vpack.c.b16 %v217, %v216
    %vm220 = vcmask 130048
    %v222 = vsel %vm220, %v188, 0
    %224 = vmatpush.bf16.msra.mxu0 0
    %225 = vmatpush.bf16.msra.mxu0 0
    %226 = vmatpush.bf16.msra.mxu0 0
    %227 = vmatpush.bf16.msra.mxu0 0
    %228 = vmatpush.bf16.msra.mxu0 0
    %229 = vmatpush.bf16.msra.mxu0 0
    %230 = vmatpush.bf16.msra.mxu0 0
    %231 = vmatpush.bf16.msra.mxu0 %v218
    %232 = vmatmul.bf16.gmra.mxu0 %v222
    %v233 = vpop.f32.mrf.mxu0
    %v234 = vadd.f32 %v211, %v233
    %v235 = vpop.f32.mrf.mxu0
    %236 = vdwg.mxu0
    %v237 = vld [vmem:[#allocation11] sm:$0x1]
    %v239 = vperm.slane %v237, 0
    %v241 = vadd.f32 %v234, %v239
    %v242 = vmax.f32 %v241, 0.0
    %v243 = vpack.c.bf16 %v242, %v242
    %v244 = vld [vmem:[#allocation12] sm:$0xf]
    %v245 = vld [vmem:[#allocation12 + $0x4] sm:$0xf]
    %v246 = vld [vmem:[#allocation12 + $0x8] sm:$0xf]
    %v247 = vld [vmem:[#allocation12 + $0xc] sm:$0xf]
    %v248 = vld [vmem:[#allocation14] sm:$0x1]
    %v250 = vperm.slane %v248, 0
    %v256 = vunpack.c.l.b16 %v244
    %v257 = vunpack.c.l.b16 %v245
    %v258 = vunpack.c.l.b16 %v246
    %v259 = vunpack.c.l.b16 %v247
    %v260 = vpack.c.b16 %v257, %v256
    %v261 = vpack.c.b16 %v259, %v258
    %vm264 = vcmask 261120
    %v266 = vsel %vm264, %v243, 0
    %268 = vmatpush.bf16.msra.mxu0 0
    %269 = vmatpush.bf16.msra.mxu0 0
    %270 = vmatpush.bf16.msra.mxu0 0
    %271 = vmatpush.bf16.msra.mxu0 0
    %272 = vmatpush.bf16.msra.mxu0 0
    %273 = vmatpush.bf16.msra.mxu0 0
    %274 = vmatpush.bf16.msra.mxu0 %v261
    %275 = vmatpush.bf16.msra.mxu0 %v260
    %276 = vmatmul.bf16.gmra.mxu0 %v266
    %v277 = vpop.f32.mrf.mxu0
    %v278 = vadd.f32 %v250, %v277
    %v279 = vpop.f32.mrf.mxu0
    %280 = vdwg.mxu0
    %v281 = vmax.f32 %v278, 0.0
    %v282 = vld [vmem:[#allocation15] sm:$0x1]
    %v284 = vperm.slane %v282, 0
    %v286 = vmul.f32 %v281, %v284
    %v287 = vsel %vm264, %v286, 0.0
    %288 = vadd.xlane.f32.xlu0 %v287
    %v289 = vpop.xlane.xlu0 %288
    %v290 = vld [vmem:[#allocation2] sm:$0x1]
    %v292 = vperm.slane %v290, 0
    %v294 = vadd.f32 %v289, %v292
    %vm295 = vcmask 7168
    %296 = vst.msk [vmem:[%s16] sm:$0xff] %vm295, %v294
    %v297 = vld [vmem:[%s9] sm:$0xf]
    %v298 = vld [vmem:[%s9 + $0x4] sm:$0xf]
    %v299 = vld [vmem:[%s10] sm:$0xf]
    %v301 = vsel %vm197, %v299, 0
    %303 = vmatpush.bf16.msra.mxu0 0
    %304 = vmatpush.bf16.msra.mxu0 0
    %305 = vmatpush.bf16.msra.mxu0 0
    %306 = vmatpush.bf16.msra.mxu0 0
    %307 = vmatpush.bf16.msra.mxu0 0
    %308 = vmatpush.bf16.msra.mxu0 0
    %309 = vmatpush.bf16.msra.mxu0 0
    %310 = vmatpush.bf16.msra.mxu0 %v301
    %311 = vmatmul.bf16.gmra.mxu0 %v195
    %v312 = vpop.f32.mrf.mxu0
    %v313 = vadd.f32 0.0, %v312
    %v314 = vpop.f32.mrf.mxu0
    %315 = vdwg.mxu0
    %v318 = vunpack.c.l.b16 %v297
    %v319 = vunpack.c.l.b16 %v298
    %v320 = vpack.c.b16 %v319, %v318
    %322 = vmatpush.bf16.msra.mxu0 0
    %323 = vmatpush.bf16.msra.mxu0 0
    %324 = vmatpush.bf16.msra.mxu0 0
    %325 = vmatpush.bf16.msra.mxu0 0
    %326 = vmatpush.bf16.msra.mxu0 0
    %327 = vmatpush.bf16.msra.mxu0 0
    %328 = vmatpush.bf16.msra.mxu0 0
    %329 = vmatpush.bf16.msra.mxu0 %v320
    %330 = vmatmul.bf16.gmra.mxu0 %v222
    %v331 = vpop.f32.mrf.mxu0
    %v332 = vadd.f32 %v313, %v331
    %v333 = vpop.f32.mrf.mxu0
    %334 = vdwg.mxu0
    %v335 = vld [vmem:[%s11] sm:$0x1]
    %v337 = vperm.slane %v335, 0
    %v339 = vadd.f32 %v332, %v337
    %v340 = vmax.f32 %v339, 0.0
    %v341 = vpack.c.bf16 %v340, %v340
    %v342 = vld [vmem:[#allocation17] sm:$0xf]
    %v343 = vld [vmem:[#allocation17 + $0x4] sm:$0xf]
    %v344 = vld [vmem:[#allocation17 + $0x8] sm:$0xf]
    %v345 = vld [vmem:[#allocation17 + $0xc] sm:$0xf]
    %v346 = vld [vmem:[%s13] sm:$0x1]
    %v348 = vperm.slane %v346, 0
    %v354 = vunpack.c.l.b16 %v342
    %v355 = vunpack.c.l.b16 %v343
    %v356 = vunpack.c.l.b16 %v344
    %v357 = vunpack.c.l.b16 %v345
    %v358 = vpack.c.b16 %v355, %v354
    %v359 = vpack.c.b16 %v357, %v356
    %v363 = vsel %vm264, %v341, 0
    %365 = vmatpush.bf16.msra.mxu0 0
    %366 = vmatpush.bf16.msra.mxu0 0
    %367 = vmatpush.bf16.msra.mxu0 0
    %368 = vmatpush.bf16.msra.mxu0 0
    %369 = vmatpush.bf16.msra.mxu0 0
    %370 = vmatpush.bf16.msra.mxu0 0
    %371 = vmatpush.bf16.msra.mxu0 %v359
    %372 = vmatpush.bf16.msra.mxu0 %v358
    %373 = vmatmul.bf16.gmra.mxu0 %v363
    %v374 = vpop.f32.mrf.mxu0
    %v375 = vadd.f32 %v348, %v374
    %v376 = vpop.f32.mrf.mxu0
    %377 = vdwg.mxu0
    %v378 = vmax.f32 %v375, 0.0
    %v379 = vld [vmem:[%s14] sm:$0x1]
    %v381 = vperm.slane %v379, 0
    %v383 = vmul.f32 %v378, %v381
    %v384 = vsel %vm264, %v383, 0.0
    %385 = vadd.xlane.f32.xlu0 %v384
    %v386 = vpop.xlane.xlu0 %385
    %v387 = vld [vmem:[#allocation3] sm:$0x1]
    %v389 = vperm.slane %v387, 0
    %v391 = vadd.f32 %v386, %v389
    %392 = vst.msk [vmem:[%s17] sm:$0xff] %vm295, %v391
    // Predicated region
    $region102: #{tpu_custom_call.1} parent=1 // pred_check
      _
    $region103: #{tpu_custom_call.1} parent=1 // pred_check_branch
      %394 = sbr.rel (0) target = $region105
    $region104: #{tpu_custom_call.1} parent=1 // pred_region
      _
    $region105: #{tpu_custom_call.1} parent=1 // pred_fallthru
      _
    // Predicated region
    $region106: #{tpu_custom_call.1} parent=1 // pred_check
      _
    $region107: #{tpu_custom_call.1} parent=1 // pred_check_branch
      %396 = sbr.rel (0) target = $region109
    $region108: #{tpu_custom_call.1} parent=1 // pred_region
      _
    $region109: #{tpu_custom_call.1} parent=1 // pred_fallthru
      _
    // Predicated region
    $region110: #{tpu_custom_call.1} parent=1 // pred_check
      _
    $region111: #{tpu_custom_call.1} parent=1 // pred_check_branch
      %398 = sbr.rel (0) target = $region113
    $region112: #{tpu_custom_call.1} parent=1 // pred_region
      _
    $region113: #{tpu_custom_call.1} parent=1 // pred_fallthru
      _
    // Predicated region
    $region114: #{tpu_custom_call.1} parent=1 // pred_check
      _
    $region115: #{tpu_custom_call.1} parent=1 // pred_check_branch
      %400 = sbr.rel (0) target = $region117
    $region116: #{tpu_custom_call.1} parent=1 // pred_region
      _
    $region117: #{tpu_custom_call.1} parent=1 // pred_fallthru
      _
    %401 = vsyncpa [#allocation5], 1
    %402 = vsyncpa [#allocation7], 1
    %403 = vsyncpa [#allocation10], 1
    %404 = vsyncpa [#allocation13], 1
    %405 = vsyncpa [#allocation16], 1

</llo_original>
